<compile_context>
chip_gen: v6e
topology: v6e:2x2x1
jax: 0.10.0
libtpu: 0.0.40
codegen_flags: <defaults>
</compile_context>

<pallas_src>
import jax
import jax.numpy as jnp
from jax import lax
from jax.experimental import pallas as pl
from jax.experimental.pallas import tpu as pltpu


# ----------------------------------------------------------------------------
# Tiled linear: out = x @ w + b      x: (M,K), w: (K,N), b: (1,N)
# Used for both the hoisted LSTM input projection and the vocab projection.
# ----------------------------------------------------------------------------
def _linear_kernel(x_ref, w_ref, b_ref, o_ref, acc_ref):
    k = pl.program_id(2)

    @pl.when(k == 0)
    def _():
        acc_ref[...] = jnp.zeros_like(acc_ref)

    acc_ref[...] += jnp.dot(x_ref[...], w_ref[...],
                            preferred_element_type=jnp.float32)

    @pl.when(k == pl.num_programs(2) - 1)
    def _():
        o_ref[...] = (acc_ref[...] + b_ref[...]).astype(o_ref.dtype)


def _pick_tile(dim, prefs):
    """Largest preferred tile that divides `dim`, else the full dimension."""
    for p in prefs:
        if dim % p == 0:
            return p
    return dim


def linear(x2d, w_t, b_row, *, out_dtype=None):
    M, K = x2d.shape
    K2, N = w_t.shape
    assert K == K2
    out_dtype = out_dtype or x2d.dtype

    tm = _pick_tile(M, (256, 128, 64, 32, 16, 8))
    tn = _pick_tile(N, (512, 256, 128))   # lane-dense output slab when possible
    tk = _pick_tile(K, (512, 256, 128))

    return pl.pallas_call(
        _linear_kernel,
        out_shape=jax.ShapeDtypeStruct((M, N), out_dtype),
        grid_spec=pltpu.PrefetchScalarGridSpec(
            num_scalar_prefetch=0,
            grid=(M // tm, N // tn, K // tk),
            in_specs=[
                pl.BlockSpec((tm, tk), lambda i, j, k: (i, k)),
                pl.BlockSpec((tk, tn), lambda i, j, k: (k, j)),
                pl.BlockSpec((1, tn), lambda i, j, k: (0, j)),
            ],
            out_specs=pl.BlockSpec((tm, tn), lambda i, j, k: (i, j)),
            scratch_shapes=[pltpu.VMEM((tm, tn), jnp.float32)],
        ),
        compiler_params=pltpu.CompilerParams(
            dimension_semantics=("parallel", "parallel", "arbitrary")),
    )(x2d, w_t, b_row)


# ----------------------------------------------------------------------------
# LSTM recurrence: grid over time chunks, in-kernel loop over steps inside a
# chunk.  gx already contains x @ W_ih^T + b_ih + b_hh, so each step only does
# h @ W_hh^T on the MXU plus the gate nonlinearities on the VPU/EUP.
# h/c are carried across chunks in VMEM scratch.
# ----------------------------------------------------------------------------
def _lstm_recurrence_kernel(gx_ref, whh_ref, h0_ref, c0_ref,
                            y_ref, hn_ref, cn_ref, h_sc, c_sc):
    chunk = gx_ref.shape[0]
    H = h_sc.shape[-1]
    ci = pl.program_id(0)

    @pl.when(ci == 0)
    def _():
        h_sc[...] = h0_ref[...].astype(jnp.float32)
        c_sc[...] = c0_ref[...].astype(jnp.float32)

    w_hh = whh_ref[...]

    def step(t, carry):
        h, c = carry
        gates = gx_ref[t] + jnp.dot(h, w_hh,
                                    preferred_element_type=jnp.float32)
        # PyTorch gate order i, f, g, o.  (For H >= 128 these slices are
        # lane-aligned; at the tiny demo H they are sub-lane but correct.)
        i = jax.nn.sigmoid(gates[:, 0 * H:1 * H])
        f = jax.nn.sigmoid(gates[:, 1 * H:2 * H])
        g = jnp.tanh(gates[:, 2 * H:3 * H])
        o = jax.nn.sigmoid(gates[:, 3 * H:4 * H])
        c = f * c + i * g
        h = o * jnp.tanh(c)
        y_ref[t] = h.astype(y_ref.dtype)
        return h, c

    h, c = lax.fori_loop(0, chunk, step, (h_sc[...], c_sc[...]),
                         unroll=chunk <= 16)
    h_sc[...] = h
    c_sc[...] = c

    @pl.when(ci == pl.num_programs(0) - 1)
    def _():
        hn_ref[...] = h.astype(hn_ref.dtype)
        cn_ref[...] = c.astype(cn_ref.dtype)


def lstm_recurrence(gx_tm, w_hh_t, h0, c0):
    """gx_tm: (T, B, 4H) precomputed input gates; returns y (T,B,H), h_n, c_n."""
    T, B, G = gx_tm.shape
    H = h0.shape[-1]
    assert G == 4 * H
    # One chunk per grid step; keep the chunk VMEM-friendly for long T.
    # (On v7x with its 64 MiB VMEM, prefer the smaller chunk end of this range.)
    chunk = _pick_tile(T, (64, 32, 16, 8, 4, 2, 1))

    out_shape = (jax.ShapeDtypeStruct((T, B, H), jnp.float32),
                 jax.ShapeDtypeStruct((B, H), jnp.float32),
                 jax.ShapeDtypeStruct((B, H), jnp.float32))
    return pl.pallas_call(
        _lstm_recurrence_kernel,
        out_shape=out_shape,
        grid_spec=pltpu.PrefetchScalarGridSpec(
            num_scalar_prefetch=0,
            grid=(T // chunk,),
            in_specs=[
                pl.BlockSpec((chunk, B, 4 * H), lambda c: (c, 0, 0)),
                pl.BlockSpec((H, 4 * H), lambda c: (0, 0)),
                pl.BlockSpec((B, H), lambda c: (0, 0)),
                pl.BlockSpec((B, H), lambda c: (0, 0)),
            ],
            out_specs=(
                pl.BlockSpec((chunk, B, H), lambda c: (c, 0, 0)),
                pl.BlockSpec((B, H), lambda c: (0, 0)),
                pl.BlockSpec((B, H), lambda c: (0, 0)),
            ),
            scratch_shapes=[pltpu.VMEM((B, H), jnp.float32),
                            pltpu.VMEM((B, H), jnp.float32)],
        ),
        compiler_params=pltpu.CompilerParams(
            dimension_semantics=("arbitrary",)),
    )(gx_tm, w_hh_t, h0, c0)


# ----------------------------------------------------------------------------
# Parameter init (PyTorch-style uniform bounds), stored kernel-friendly
# (transposed weights, fused LSTM biases).
# ----------------------------------------------------------------------------
def _uniform(key, shape, bound):
    return jax.random.uniform(key, shape, jnp.float32, -bound, bound)


def init_params(key, n_vocab, n_embed, n_hidden):
    ks = jax.random.split(key, 8)
    H = n_hidden
    bnd = H ** -0.5
    w_ih = _uniform(ks[1], (4 * H, n_embed), bnd)
    w_hh = _uniform(ks[2], (4 * H, H), bnd)
    b_ih = _uniform(ks[3], (4 * H,), bnd)
    b_hh = _uniform(ks[4], (4 * H,), bnd)
    w_l1 = _uniform(ks[5], (n_vocab, H), bnd)
    b_l1 = _uniform(ks[6], (n_vocab,), bnd)
    return dict(
        embedding=jax.random.normal(ks[0], (n_vocab, n_embed), jnp.float32),
        w_ih_t=jnp.asarray(w_ih.T),                      # (E, 4H)
        w_hh_t=jnp.asarray(w_hh.T),                      # (H, 4H)
        b_gates=(b_ih + b_hh).reshape(1, 4 * H),         # fused LSTM biases
        w_l1_t=jnp.asarray(w_l1.T),                      # (H, V)
        b_l1=b_l1.reshape(1, n_vocab),
    )


# ----------------------------------------------------------------------------
# Forward pass (mirrors LSTM_NET.forward: embedding -> LSTM -> Linear)
# ----------------------------------------------------------------------------
def lstm_net_forward(params, target, h_0=None, c_0=None):
    B, T = target.shape
    E = params["embedding"].shape[1]
    H = params["w_hh_t"].shape[0]
    V = params["w_l1_t"].shape[1]

    # 1. embedding gather, directly time-major.
    # TODO(synk): row-gather (nn.Embedding) stays plain-JAX glue; a Pallas gather
    # via scalar-prefetch/Element BlockSpec is not worthwhile at these sizes.
    e_tm = jnp.take(params["embedding"], target.T, axis=0)          # (T, B, E)

    # 2. hoisted input projection: one big MXU GEMM over all T*B rows.
    gx = linear(e_tm.reshape(T * B, E), params["w_ih_t"], params["b_gates"])
    gx = gx.reshape(T, B, 4 * H)                                    # (T, B, 4H)

    # 3. initial state (PyTorch default 0 -> zero state; accepts (1,B,H) or (B,H)).
    def _state(s):
        if s is None or isinstance(s, (int, float)):
            return jnp.zeros((B, H), jnp.float32)
        return jnp.asarray(s, jnp.float32).reshape(B, H)
    h0, c0 = _state(h_0), _state(c_0)

    # 4. pad batch to a multiple of 8 sublanes for the recurrence only.
    Bp = -(-B // 8) * 8
    if Bp != B:
        gx = jnp.pad(gx, ((0, 0), (0, Bp - B), (0, 0)))
        h0 = jnp.pad(h0, ((0, Bp - B), (0, 0)))
        c0 = jnp.pad(c0, ((0, Bp - B), (0, 0)))

    y_tm, hn, cn = lstm_recurrence(gx, params["w_hh_t"], h0, c0)
    y_tm, hn, cn = y_tm[:, :B], hn[:B], cn[:B]

    # 5. vocab projection, fed batch-major so the large logits tensor is
    #    written directly in (B, T, V) order (only the small y is permuted).
    y_bm = jnp.transpose(y_tm, (1, 0, 2)).reshape(B * T, H)
    v = linear(y_bm, params["w_l1_t"], params["b_l1"]).reshape(B, T, V)

    # PyTorch returns h_out / c_out shaped (num_layers=1, B, H).
    return v, hn[None], cn[None]


if __name__ == "__main__":
    key = jax.random.PRNGKey(0)
    n_vocab, n_embed, n_hidden = 64, 32, 32
    B, T = 2, 8

    params = init_params(key, n_vocab, n_embed, n_hidden)
    target = jax.random.randint(jax.random.fold_in(key, 99), (B, T),
                                0, n_vocab, dtype=jnp.int32)

    # default (zero) initial state
    v, h_out, c_out = lstm_net_forward(params, target)
    jax.block_until_ready(v)

    # feed the returned state back in (exercises the non-zero-state path)
    v2, h_out2, c_out2 = lstm_net_forward(params, target, h_out, c_out)
    jax.block_until_ready(v2)

    assert v.shape == (B, T, n_vocab)
    assert h_out.shape == (1, B, n_hidden) and c_out.shape == (1, B, n_hidden)
    print("KERNEL_OK")
</pallas_src>

<mosaic_0001>
module attributes {stable_mosaic.version = 11 : i64} {
  func.func @_linear_kernel(%arg0: i32, %arg1: i32, %arg2: i32, %arg3: memref<16x32xf32, #tpu.memory_space<vmem>>, %arg4: memref<32x128xf32, #tpu.memory_space<vmem>>, %arg5: memref<1x128xf32, #tpu.memory_space<vmem>>, %arg6: memref<16x128xf32, #tpu.memory_space<vmem>>, %arg7: memref<16x128xf32, #tpu.memory_space<vmem>>) attributes {dimension_semantics = [#tpu.dimension_semantics<parallel>, #tpu.dimension_semantics<parallel>, #tpu.dimension_semantics<arbitrary>], iteration_bounds = array<i64: 1, 1, 1>, scalar_prefetch = 0 : i64, scratch_operands = 1 : i64, tpu.core_type = #tpu.core_type<tc>, window_params = [{transform_indices = @transform_0, window_bounds = array<i64: 16, 32>}, {transform_indices = @transform_1, window_bounds = array<i64: 32, 128>}, {transform_indices = @transform_2, window_bounds = array<i64: 1, 128>}, {transform_indices = @transform_3, window_bounds = array<i64: 16, 128>}]} {
    %c0_i32 = arith.constant 0 : i32
    %0 = arith.cmpi eq, %arg2, %c0_i32 : i32
    %1 = arith.extui %0 : i1 to i32
    %c0_i32_0 = arith.constant 0 : i32
    %2 = arith.cmpi ne, %1, %c0_i32_0 : i32
    scf.if %2 {
      %cst_10 = arith.constant 0.000000e+00 : f32
      %12 = vector.broadcast %cst_10 : f32 to vector<16x128xf32>
      %c0_11 = arith.constant 0 : index
      %c0_12 = arith.constant 0 : index
      %13 = vector.load %arg7[%c0_11, %c0_12] : memref<16x128xf32, #tpu.memory_space<vmem>>, vector<16x128xf32>
      tpu.vector_store %arg7[%c0_11, %c0_12], %12 {strides = array<i32>} : memref<16x128xf32, #tpu.memory_space<vmem>>, vector<16x128xf32>,
    } else {
    }
    %c0 = arith.constant 0 : index
    %c0_1 = arith.constant 0 : index
    %3 = vector.load %arg7[%c0, %c0_1] : memref<16x128xf32, #tpu.memory_space<vmem>>, vector<16x128xf32>
    %c0_2 = arith.constant 0 : index
    %c0_3 = arith.constant 0 : index
    %4 = vector.load %arg3[%c0_2, %c0_3] : memref<16x32xf32, #tpu.memory_space<vmem>>, vector<16x32xf32>
    %c0_4 = arith.constant 0 : index
    %c0_5 = arith.constant 0 : index
    %5 = vector.load %arg4[%c0_4, %c0_5] : memref<32x128xf32, #tpu.memory_space<vmem>>, vector<32x128xf32>
    %cst = arith.constant dense<0.000000e+00> : vector<16x128xf32>
    %6 = tpu.matmul %4, %5, %cst {dimension_numbers = #tpu.dot_dimension_numbers<[1], [0], [0], [1], [0, 0, 1, 1], [], []>} : vector<16x32xf32>, vector<32x128xf32>, vector<16x128xf32> -> vector<16x128xf32>
    %7 = arith.addf %3, %6 : vector<16x128xf32>
    %c0_6 = arith.constant 0 : index
    %c0_7 = arith.constant 0 : index
    %8 = vector.load %arg7[%c0_6, %c0_7] : memref<16x128xf32, #tpu.memory_space<vmem>>, vector<16x128xf32>
    tpu.vector_store %arg7[%c0_6, %c0_7], %7 {strides = array<i32>} : memref<16x128xf32, #tpu.memory_space<vmem>>, vector<16x128xf32>,
    %c0_i32_8 = arith.constant 0 : i32
    %9 = arith.cmpi eq, %arg2, %c0_i32_8 : i32
    %10 = arith.extui %9 : i1 to i32
    %c0_i32_9 = arith.constant 0 : i32
    %11 = arith.cmpi ne, %10, %c0_i32_9 : i32
    scf.if %11 {
      %c0_10 = arith.constant 0 : index
      %c0_11 = arith.constant 0 : index
      %12 = vector.load %arg7[%c0_10, %c0_11] : memref<16x128xf32, #tpu.memory_space<vmem>>, vector<16x128xf32>
      %c0_12 = arith.constant 0 : index
      %c0_13 = arith.constant 0 : index
      %13 = vector.load %arg5[%c0_12, %c0_13] : memref<1x128xf32, #tpu.memory_space<vmem>>, vector<1x128xf32>
      %14 = vector.broadcast %13 : vector<1x128xf32> to vector<16x128xf32>
      %15 = arith.addf %12, %14 : vector<16x128xf32>
      %c0_14 = arith.constant 0 : index
      %c0_15 = arith.constant 0 : index
      %16 = vector.load %arg6[%c0_14, %c0_15] : memref<16x128xf32, #tpu.memory_space<vmem>>, vector<16x128xf32>
      tpu.vector_store %arg6[%c0_14, %c0_15], %15 {strides = array<i32>} : memref<16x128xf32, #tpu.memory_space<vmem>>, vector<16x128xf32>,
    } else {
    }
    return
  }
  func.func @transform_0(%arg0: i32, %arg1: i32, %arg2: i32) -> (i32, i32) {
    %c0_i32 = arith.constant 0 : i32
    return %arg0, %arg2 : i32, i32
  }
  func.func @transform_1(%arg0: i32, %arg1: i32, %arg2: i32) -> (i32, i32) {
    %c0_i32 = arith.constant 0 : i32
    return %arg2, %arg1 : i32, i32
  }
  func.func @transform_2(%arg0: i32, %arg1: i32, %arg2: i32) -> (i32, i32) {
    %c0_i32 = arith.constant 0 : i32
    %c0_i32_0 = arith.constant 0 : i32
    return %c0_i32, %arg1 : i32, i32
  }
  func.func @transform_3(%arg0: i32, %arg1: i32, %arg2: i32) -> (i32, i32) {
    %c0_i32 = arith.constant 0 : i32
    return %arg0, %arg1 : i32, i32
  }
}

</mosaic_0001>

<llo_original>
// kernel: tpu_custom_call.1
$region0: #{tpu_custom_call.1}
  #allocation0 [shape = 'u32[]', space=smem, size = 0x4, offset = 0x4, fixed_abs, tag = 'smem constant byte address 0x4 - core index']
  #allocation1 [shape = 'u32[144,128]{1,0:T(1,128)}', space=vmem, size = 0x12000, scoped, tag = 'internal scratch']
  #allocation2 [shape = 'f32[16,128]{1,0:T(8,128)}', space=vmem, size = 0x2000, scoped, tag = 'scratch operand']
  %s0 = inlined_call_operand.hbm [shape: f32[16,32], index: 0, kind: input, shape index: {}]
  %s1 = inlined_call_operand.hbm [shape: f32[32,128], index: 1, kind: input, shape index: {}]
  %s2 = inlined_call_operand.vmem [shape: f32[1,128], index: 2, kind: input, shape index: {}]
  %s3 = inlined_call_operand.hbm [shape: f32[16,128], index: 3, kind: output, shape index: {}]
  %s4 = sld [smem:[#allocation0]]
  $region38: #{tpu_custom_call.1} parent=0
    _
  %s6 = ssub.s32 1, %s4
  %s7 = scalar_select 0, %s6, %s4
  $region1: #{tpu_custom_call.1} parent=0
    #allocation3 [shape = 'u8[8192]{0}', space=vmem, size = 0x2000, scoped, tag = 'input window, operand 0, single buffered']
    #allocation4 [shape = 's32[1]{0}', space=sflag, size = 0x4, scoped, tag = 'scoped memory for tpu_custom_call.1']
    #allocation5 [shape = 's32[1]{0}', space=sflag, size = 0x4, scoped, tag = 'scoped memory for tpu_custom_call.1']
    #allocation6 [shape = 'u8[16384]{0}', space=vmem, size = 0x4000, scoped, tag = 'input window, operand 1, single buffered']
    #allocation7 [shape = 's32[1]{0}', space=sflag, size = 0x4, scoped, tag = 'scoped memory for tpu_custom_call.1']
    #allocation8 [shape = 'u8[8192]{0}', space=vmem, size = 0x2000, scoped, tag = 'output window, operand 0, single buffered']
    %8 = vsyncpa [#allocation4], 0
    %9 = vsyncpa [#allocation7], 0
    %10 = vsyncpa [#allocation5], 0
    // Predicated region
    $region2: #{tpu_custom_call.1} parent=1 // pred_check
      _
    $region3: #{tpu_custom_call.1} parent=1 // pred_check_branch
      %12 = sbr.rel (0) target = $region5
    $region4: #{tpu_custom_call.1} parent=1 // pred_region
      %s14 = ssub.s32 256, 256
      %15 = vsyncadd [#allocation4], %s14
      %s16 = sshll.u32 [#allocation3], 4
      %s17 = int_to_ptr.vmem [resolvable:$true] %s16
      %22 = dma.hbm_to_vmem [thread:$0]  %s0, 256, %s17, [#allocation4], 128, 128, 8
    $region5: #{tpu_custom_call.1} parent=1 // pred_fallthru
      _
    // Predicated region
    $region6: #{tpu_custom_call.1} parent=1 // pred_check
      _
    $region7: #{tpu_custom_call.1} parent=1 // pred_check_branch
      %24 = sbr.rel (0) target = $region9
    $region8: #{tpu_custom_call.1} parent=1 // pred_region
      %s26 = ssub.s32 512, 512
      %27 = vsyncadd [#allocation7], %s26
      %s28 = sshll.u32 [#allocation6], 4
      %s29 = int_to_ptr.vmem [resolvable:$true] %s28
      %34 = dma.hbm_to_vmem [thread:$0]  %s1, 512, %s29, [#allocation7], 128, 128, 8
    $region9: #{tpu_custom_call.1} parent=1 // pred_fallthru
      _
    // Predicated region
    $region10: #{tpu_custom_call.1} parent=1 // pred_check
      _
    $region11: #{tpu_custom_call.1} parent=1 // pred_check_branch
      %36 = sbr.rel (0) target = $region13
    $region12: #{tpu_custom_call.1} parent=1 // pred_region
      _
    $region13: #{tpu_custom_call.1} parent=1 // pred_fallthru
      _
    // Predicated region
    $region14: #{tpu_custom_call.1} parent=1 // pred_check
      _
    $region15: #{tpu_custom_call.1} parent=1 // pred_check_branch
      %38 = sbr.rel (0) target = $region17
    $region16: #{tpu_custom_call.1} parent=1 // pred_region
      %39 = dma.done [#allocation4], 256
    $region17: #{tpu_custom_call.1} parent=1 // pred_fallthru
      _
    // Predicated region
    $region18: #{tpu_custom_call.1} parent=1 // pred_check
      _
    $region19: #{tpu_custom_call.1} parent=1 // pred_check_branch
      %41 = sbr.rel (0) target = $region21
    $region20: #{tpu_custom_call.1} parent=1 // pred_region
      %42 = dma.done [#allocation7], 512
    $region21: #{tpu_custom_call.1} parent=1 // pred_fallthru
      _
    %p43 = scmp.eq.s32.totalorder 0, 0
    // Predicated region
    $region22: #{tpu_custom_call.1} parent=1 // pred_check
      %p44 = pneg %p43
    $region23: #{tpu_custom_call.1} parent=1 // pred_check_branch
      %46 = sbr.rel (%p44) target = $region25
    $region24: #{tpu_custom_call.1} parent=1 // pred_region
      %47 = vst [vmem:[#allocation2] sm:$0xff] 0.0
      %48 = vst [vmem:[#allocation2 + $0x8] sm:$0xff] 0.0
    $region25: #{tpu_custom_call.1} parent=1 // pred_fallthru
      _
    %v49 = vld [vmem:[#allocation2] sm:$0xff]
    %v50 = vld [vmem:[#allocation2 + $0x8] sm:$0xff]
    %v51 = vld [vmem:[#allocation3] sm:$0xff]
    %v52 = vld [vmem:[#allocation3 + $0x8] sm:$0xff]
    %v53 = vld [vmem:[#allocation6] sm:$0xff]
    %v54 = vld [vmem:[#allocation6 + $0x8] sm:$0xff]
    %v55 = vld [vmem:[#allocation6 + $0x10] sm:$0xff]
    %v56 = vld [vmem:[#allocation6 + $0x18] sm:$0xff]
    %vm57 = vcmask 261120
    %v59 = vsel %vm57, %v51, 0
    %v62 = vsel %vm57, %v52, 0
    %64 = vmatprep.subr.mxu0 0.0
    %65 = vmatpush1.msra.mxu0 0.0
    %66 = vmatprep.subr.mxu0 0.0
    %67 = vmatpush1.msra.mxu0 0.0
    %68 = vmatprep.subr.mxu0 0.0
    %69 = vmatpush1.msra.mxu0 0.0
    %70 = vmatprep.subr.mxu0 0.0
    %71 = vmatpush1.msra.mxu0 0.0
    %72 = vmatprep.subr.mxu0 0.0
    %73 = vmatpush1.msra.mxu0 0.0
    %74 = vmatprep.subr.mxu0 0.0
    %75 = vmatpush1.msra.mxu0 0.0
    %76 = vmatprep.subr.mxu0 0.0
    %77 = vmatpush1.msra.mxu0 0.0
    %78 = vmatprep.subr.mxu0 0.0
    %79 = vmatpush1.msra.mxu0 0.0
    %80 = vmatprep.subr.mxu0 0.0
    %81 = vmatpush1.msra.mxu0 0.0
    %82 = vmatprep.subr.mxu0 0.0
    %83 = vmatpush1.msra.mxu0 0.0
    %84 = vmatprep.subr.mxu0 0.0
    %85 = vmatpush1.msra.mxu0 0.0
    %86 = vmatprep.subr.mxu0 0.0
    %87 = vmatpush1.msra.mxu0 0.0
    %88 = vmatprep.subr.mxu0 0.0
    %89 = vmatpush1.msra.mxu0 %v56
    %90 = vmatprep.subr.mxu0 0.0
    %91 = vmatpush1.msra.mxu0 %v55
    %92 = vmatprep.subr.mxu0 0.0
    %93 = vmatpush1.msra.mxu0 %v54
    %94 = vmatprep.subr.mxu0 0.0
    %95 = vmatpush1.msra.mxu0 %v53
    %96 = vmatprep.subr.mxu0 0.0
    %97 = vmatpush2.msra.mxu0 0.0
    %98 = vmatprep.subr.mxu0 0.0
    %99 = vmatpush2.msra.mxu0 0.0
    %100 = vmatprep.subr.mxu0 0.0
    %101 = vmatpush2.msra.mxu0 0.0
    %102 = vmatprep.subr.mxu0 0.0
    %103 = vmatpush2.msra.mxu0 0.0
    %104 = vmatprep.subr.mxu0 0.0
    %105 = vmatpush2.msra.mxu0 0.0
    %106 = vmatprep.subr.mxu0 0.0
    %107 = vmatpush2.msra.mxu0 0.0
    %108 = vmatprep.subr.mxu0 0.0
    %109 = vmatpush2.msra.mxu0 0.0
    %110 = vmatprep.subr.mxu0 0.0
    %111 = vmatpush2.msra.mxu0 0.0
    %112 = vmatprep.subr.mxu0 0.0
    %113 = vmatpush2.msra.mxu0 0.0
    %114 = vmatprep.subr.mxu0 0.0
    %115 = vmatpush2.msra.mxu0 0.0
    %116 = vmatprep.subr.mxu0 0.0
    %117 = vmatpush2.msra.mxu0 0.0
    %118 = vmatprep.subr.mxu0 0.0
    %119 = vmatpush2.msra.mxu0 0.0
    %120 = vmatprep.subr.mxu0 0.0
    %121 = vmatpush2.msra.mxu0 0.0
    %122 = vmatprep.subr.mxu0 0.0
    %123 = vmatpush2.msra.mxu0 0.0
    %124 = vmatprep.subr.mxu0 0.0
    %125 = vmatpush2.msra.mxu0 0.0
    %126 = vmatprep.subr.mxu0 0.0
    %127 = vmatpush2.msra.mxu0 0.0
    %128 = vmatprep.mubr.f32.mxu0 0.0
    %129 = vmatmul.mubr.f32.gmra.mxu0 %v59
    %v130 = vpop.f32.mrf.mxu0
    %v131 = vadd.f32 0.0, %v130
    %v132 = vpop.f32.mrf.mxu0
    %133 = vmatprep.mubr.f32.mxu0 0.0
    %134 = vmatmul.mubr.f32.gmra.mxu0 %v62
    %v135 = vpop.f32.mrf.mxu0
    %v136 = vadd.f32 0.0, %v135
    %v137 = vpop.f32.mrf.mxu0
    %138 = vdwg.mxu0
    %v139 = vadd.f32 %v49, %v131
    %v140 = vadd.f32 %v50, %v136
    %141 = vst [vmem:[#allocation2] sm:$0xff] %v139
    %142 = vst [vmem:[#allocation2 + $0x8] sm:$0xff] %v140
    // Predicated region
    $region26: #{tpu_custom_call.1} parent=1 // pred_check
      %p143 = pneg %p43
    $region27: #{tpu_custom_call.1} parent=1 // pred_check_branch
      %145 = sbr.rel (%p143) target = $region29
    $region28: #{tpu_custom_call.1} parent=1 // pred_region
      %v146 = vld [vmem:[#allocation2] sm:$0xff]
      %v147 = vld [vmem:[#allocation2 + $0x8] sm:$0xff]
      %v148 = vld [vmem:[%s2] sm:$0x1]
      %v150 = vlaneseq
      %v151 = vshrl.u32 %v150, 7
      %v152 = vsub.s32 0, %v151
      %v153 = vrot.slane %v148, %v152
      %v155 = vadd.f32 %v146, %v153
      %v156 = vadd.f32 %v147, %v153
      %157 = vst [vmem:[#allocation8] sm:$0xff] %v155
      %158 = vst [vmem:[#allocation8 + $0x8] sm:$0xff] %v156
    $region29: #{tpu_custom_call.1} parent=1 // pred_fallthru
      _
    // Predicated region
    $region30: #{tpu_custom_call.1} parent=1 // pred_check
      _
    $region31: #{tpu_custom_call.1} parent=1 // pred_check_branch
      %160 = sbr.rel (0) target = $region33
    $region32: #{tpu_custom_call.1} parent=1 // pred_region
      %s162 = ssub.s32 256, 256
      %163 = vsyncadd [#allocation5], %s162
      %s164 = sshll.u32 [#allocation8], 4
      %s165 = int_to_ptr.vmem [resolvable:$true] %s164
      %170 = dma.vmem_to_hbm [thread:$0]  %s165, 256, %s3, [#allocation5], 128, 128, 8
    $region33: #{tpu_custom_call.1} parent=1 // pred_fallthru
      _
    // Predicated region
    $region34: #{tpu_custom_call.1} parent=1 // pred_check
      _
    $region35: #{tpu_custom_call.1} parent=1 // pred_check_branch
      %172 = sbr.rel (0) target = $region37
    $region36: #{tpu_custom_call.1} parent=1 // pred_region
      %173 = dma.done [#allocation5], 256
    $region37: #{tpu_custom_call.1} parent=1 // pred_fallthru
      _
    %174 = vsyncpa [#allocation4], 1
    %175 = vsyncpa [#allocation7], 1
    %176 = vsyncpa [#allocation5], 1

</llo_original>
